<compile_context>
chip_gen: v5e
topology: v5e:2x2
jax: 0.10.0
libtpu: 0.0.40
codegen_flags: <defaults>
</compile_context>

<pallas_src>
import jax
import jax.numpy as jnp
from jax.experimental import pallas as pl
from jax.experimental.pallas import tpu as pltpu


def _attention_kernel(z_ref, w1_ref, b1_ref, w2_ref, out_ref, beta_ref):
    # z_ref:    (TB, N, D)  batch tile of sequences
    # w1_ref:   (D, H)      first Linear weight (shared)
    # b1_ref:   (1, H)      first Linear bias   (shared)
    # w2_ref:   (1, H)      second Linear weight as a row vector (no bias)
    # out_ref:  (TB, D)     attention-pooled output
    # beta_ref: (TB, N)     lane-dense attention weights
    TB, N, D = z_ref.shape

    z = z_ref[...]                                                    # (TB, N, D)

    # ---- projection MLP ----
    # One MXU matmul over all TB*N rows (fills sublanes), f32 accumulation.
    # (bf16 inputs would roughly double MXU throughput on v6e/v7x once D/H
    #  exceed toy sizes; kept f32 here for exactness at these shapes.)
    zf = z.reshape(TB * N, D)
    h = jnp.dot(zf, w1_ref[...], preferred_element_type=jnp.float32)  # (TB*N, H)
    h = jnp.tanh(h + b1_ref[...])                                     # (TB*N, H)

    # Linear(H -> 1) as VPU multiply + XLU lane reduce: keeps the MXU free
    # (an (., H) @ (H, 1) matmul has a 1-lane-wide output -> ~0% MXU util).
    hr = h.reshape(TB, N, H if (H := w1_ref.shape[1]) else H)         # (TB, N, H)
    s = jnp.sum(hr * w2_ref[...], axis=-1, keepdims=True)             # (TB, N, 1)

    # ---- stable softmax over the sequence axis (dim=1) ----
    m = jnp.max(s, axis=1, keepdims=True)                             # (TB, 1, 1)
    p = jnp.exp(s - m)                                                # (TB, N, 1)
    denom = jnp.sum(p, axis=1, keepdims=True)                         # (TB, 1, 1)
    inv = pl.reciprocal(denom, approx=True)                           # EUP slot (free-ish)
    inv = inv * (2.0 - denom * inv)                                   # 1 Newton step -> ~f32 exact
    beta = p * inv                                                    # (TB, N, 1)

    # ---- weighted sum over the sequence: VPU broadcast-mul + XLU sublane reduce ----
    out = jnp.sum(beta * z, axis=1)                                   # (TB, D)

    out_ref[...] = out.astype(out_ref.dtype)
    beta_ref[...] = beta.reshape(TB, N).astype(beta_ref.dtype)        # lane-dense store


def _choose_batch_tile(B, N, D, itemsize=4):
    """Batches per grid step: multiple of 8 (sublane-aligned) or the full batch."""
    if B <= 8:
        return B
    # Fill MXU sublanes: aim for TB*N >= 128 rows into the (TB*N, D)@(D, H) matmul.
    tb = -(-128 // max(N, 1))
    tb = ((tb + 7) // 8) * 8
    # VMEM: keep the double-buffered z tile under ~8 MiB -> safe even with the
    # 32 MiB scoped default and v7x's 64 MiB physical VMEM.
    vmem_cap = (8 * 1024 * 1024) // (2 * max(N * D * itemsize, 1))
    vmem_cap = max(8, (vmem_cap // 8) * 8)
    tb = min(tb, vmem_cap)
    # Keep >= 2 grid steps so the "parallel" batch axis can shard across the
    # two TensorCores on v7x.
    half = ((B // 2) // 8) * 8
    if half >= 8:
        tb = min(tb, half)
    return B if tb >= B else tb


def attention_forward(z, w1, b1, w2):
    """z: (B, N, D) float32. Returns (out (B, D), beta (B, N, 1))."""
    B, N, D = z.shape
    H = w1.shape[1]
    itemsize = jnp.dtype(z.dtype).itemsize

    b1_row = b1.reshape(1, H)
    w2_row = w2.reshape(1, H)          # Linear(H, 1, bias=False) weight as a row

    TB = _choose_batch_tile(B, N, D, itemsize)
    grid = (pl.cdiv(B, TB),)

    out_shapes = (
        jax.ShapeDtypeStruct((B, D), z.dtype),
        jax.ShapeDtypeStruct((B, N), z.dtype),     # lane-dense beta
    )

    cost = pl.CostEstimate(
        flops=2 * B * N * D * H + 2 * B * N * H + 2 * B * N * D,
        transcendentals=B * N * (H + 1),           # tanh + exp
        bytes_accessed=itemsize * (B * N * D + D * H + 2 * H + B * D + B * N),
    )

    grid_spec = pltpu.PrefetchScalarGridSpec(
        num_scalar_prefetch=0,
        grid=grid,
        in_specs=[
            pl.BlockSpec((TB, N, D), lambda i: (i, 0, 0)),   # z batch tile
            pl.BlockSpec((D, H), lambda i: (0, 0)),          # W1 (shared)
            pl.BlockSpec((1, H), lambda i: (0, 0)),          # b1 (shared)
            pl.BlockSpec((1, H), lambda i: (0, 0)),          # W2 row (shared)
        ],
        out_specs=[
            pl.BlockSpec((TB, D), lambda i: (i, 0)),         # pooled output
            pl.BlockSpec((TB, N), lambda i: (i, 0)),         # beta, lane-dense
        ],
    )

    out, beta = pl.pallas_call(
        _attention_kernel,
        out_shape=out_shapes,
        grid_spec=grid_spec,
        cost_estimate=cost,
        compiler_params=pltpu.CompilerParams(
            dimension_semantics=("parallel",),
            vmem_limit_bytes=32 * 1024 * 1024,
        ),
    )(z, w1, b1_row, w2_row)

    # Match the PyTorch module's beta shape (B, N, 1); this reshape is free in XLA.
    return out, beta.reshape(B, N, 1)


def _reference(z, w1, b1, w2):
    """Pure-JAX reference mirroring the PyTorch forward."""
    w = jnp.tanh(z @ w1 + b1) @ w2          # (B, N, 1)
    beta = jax.nn.softmax(w, axis=1)        # softmax over dim=1
    out = jnp.sum(beta * z, axis=1)         # (B, D)
    return out, beta


if __name__ == "__main__":
    def _run_case(B, N, D, H, seed=0):
        key = jax.random.PRNGKey(seed)
        kz, kw1, kb1, kw2 = jax.random.split(key, 4)

        z = jax.random.normal(kz, (B, N, D), dtype=jnp.float32)
        # Shapes from nn.Linear(in_size, hidden), nn.Linear(hidden, 1, bias=False),
        # scaled like uniform fan-in init.
        w1 = (jax.random.uniform(kw1, (D, H), minval=-1.0, maxval=1.0)
              / jnp.sqrt(D)).astype(jnp.float32)
        b1 = (jax.random.uniform(kb1, (H,), minval=-1.0, maxval=1.0)
              / jnp.sqrt(D)).astype(jnp.float32)
        w2 = (jax.random.uniform(kw2, (H, 1), minval=-1.0, maxval=1.0)
              / jnp.sqrt(H)).astype(jnp.float32)

        out, beta = attention_forward(z, w1, b1, w2)
        out = jax.block_until_ready(out)
        beta = jax.block_until_ready(beta)

        out_ref, beta_ref = _reference(z, w1, b1, w2)
        assert out.shape == (B, D) and beta.shape == (B, N, 1)
        assert jnp.allclose(out, out_ref, atol=2e-5, rtol=2e-5), f"out mismatch (B={B})"
        assert jnp.allclose(beta, beta_ref, atol=2e-5, rtol=2e-5), f"beta mismatch (B={B})"

    _run_case(B=16, N=8, D=32, H=16)   # batch-tiled path: TB=8, 2 grid steps
    _run_case(B=2, N=8, D=32, H=16)    # tiny-batch path: single full block
    print("KERNEL_OK")
</pallas_src>

<mosaic_0001>
module attributes {stable_mosaic.version = 11 : i64} {
  func.func @_attention_kernel(%arg0: i32, %arg1: memref<8x8x32xf32, #tpu.memory_space<vmem>>, %arg2: memref<32x16xf32, #tpu.memory_space<vmem>>, %arg3: memref<1x16xf32, #tpu.memory_space<vmem>>, %arg4: memref<1x16xf32, #tpu.memory_space<vmem>>, %arg5: memref<8x32xf32, #tpu.memory_space<vmem>>, %arg6: memref<8x8xf32, #tpu.memory_space<vmem>>) attributes {dimension_semantics = [#tpu.dimension_semantics<parallel>], iteration_bounds = array<i64: 2>, scalar_prefetch = 0 : i64, scratch_operands = 0 : i64, tpu.core_type = #tpu.core_type<tc>, window_params = [{transform_indices = @transform_0, window_bounds = array<i64: 8, 8, 32>}, {pipeline_mode = #tpu.pipeline_mode<synchronous>, transform_indices = @transform_1, window_bounds = array<i64: 32, 16>}, {pipeline_mode = #tpu.pipeline_mode<synchronous>, transform_indices = @transform_2, window_bounds = array<i64: 1, 16>}, {pipeline_mode = #tpu.pipeline_mode<synchronous>, transform_indices = @transform_3, window_bounds = array<i64: 1, 16>}, {transform_indices = @transform_4, window_bounds = array<i64: 8, 32>}, {transform_indices = @transform_5, window_bounds = array<i64: 8, 8>}]} {
    %c0 = arith.constant 0 : index
    %c0_0 = arith.constant 0 : index
    %c0_1 = arith.constant 0 : index
    %0 = vector.load %arg1[%c0, %c0_0, %c0_1] : memref<8x8x32xf32, #tpu.memory_space<vmem>>, vector<8x8x32xf32>
    %1 = vector.shape_cast %0 : vector<8x8x32xf32> to vector<64x32xf32>
    %c0_2 = arith.constant 0 : index
    %c0_3 = arith.constant 0 : index
    %2 = vector.load %arg2[%c0_2, %c0_3] : memref<32x16xf32, #tpu.memory_space<vmem>>, vector<32x16xf32>
    %cst = arith.constant dense<0.000000e+00> : vector<64x16xf32>
    %3 = tpu.matmul %1, %2, %cst {dimension_numbers = #tpu.dot_dimension_numbers<[1], [0], [0], [1], [0, 0, 1, 1], [], []>} : vector<64x32xf32>, vector<32x16xf32>, vector<64x16xf32> -> vector<64x16xf32>
    %c0_4 = arith.constant 0 : index
    %c0_5 = arith.constant 0 : index
    %4 = vector.load %arg3[%c0_4, %c0_5] : memref<1x16xf32, #tpu.memory_space<vmem>>, vector<1x16xf32>
    %5 = vector.broadcast %4 : vector<1x16xf32> to vector<64x16xf32>
    %6 = arith.addf %3, %5 : vector<64x16xf32>
    %7 = math.tanh %6 : vector<64x16xf32>
    %8 = vector.shape_cast %7 : vector<64x16xf32> to vector<8x8x16xf32>
    %c0_6 = arith.constant 0 : index
    %c0_7 = arith.constant 0 : index
    %9 = vector.load %arg4[%c0_6, %c0_7] : memref<1x16xf32, #tpu.memory_space<vmem>>, vector<1x16xf32>
    %10 = vector.shape_cast %9 : vector<1x16xf32> to vector<1x1x16xf32>
    %11 = vector.broadcast %10 : vector<1x1x16xf32> to vector<8x8x16xf32>
    %12 = arith.mulf %8, %11 : vector<8x8x16xf32>
    %cst_8 = arith.constant dense<0.000000e+00> : vector<8x8xf32>
    %13 = vector.multi_reduction <add>, %12, %cst_8 [2] : vector<8x8x16xf32> to vector<8x8xf32>
    %14 = vector.shape_cast %13 : vector<8x8xf32> to vector<8x8x1xf32>
    %cst_9 = arith.constant dense<0xFF800000> : vector<8x1xf32>
    %15 = vector.multi_reduction <maximumf>, %14, %cst_9 [1] : vector<8x8x1xf32> to vector<8x1xf32>
    %16 = vector.shape_cast %15 : vector<8x1xf32> to vector<8x1x1xf32>
    %17 = vector.broadcast %16 : vector<8x1x1xf32> to vector<8x8x1xf32>
    %18 = arith.subf %14, %17 : vector<8x8x1xf32>
    %19 = math.exp %18 : vector<8x8x1xf32>
    %cst_10 = arith.constant dense<0.000000e+00> : vector<8x1xf32>
    %20 = vector.multi_reduction <add>, %19, %cst_10 [1] : vector<8x8x1xf32> to vector<8x1xf32>
    %21 = vector.shape_cast %20 : vector<8x1xf32> to vector<8x1x1xf32>
    %22 = tpu.reciprocal %21 {approx = true} : vector<8x1x1xf32> -> vector<8x1x1xf32>
    %23 = arith.mulf %21, %22 : vector<8x1x1xf32>
    %cst_11 = arith.constant 2.000000e+00 : f32
    %24 = vector.broadcast %cst_11 : f32 to vector<8x1x1xf32>
    %25 = arith.subf %24, %23 : vector<8x1x1xf32>
    %26 = arith.mulf %22, %25 : vector<8x1x1xf32>
    %27 = vector.broadcast %26 : vector<8x1x1xf32> to vector<8x8x1xf32>
    %28 = arith.mulf %19, %27 : vector<8x8x1xf32>
    %29 = vector.broadcast %28 : vector<8x8x1xf32> to vector<8x8x32xf32>
    %30 = arith.mulf %29, %0 : vector<8x8x32xf32>
    %cst_12 = arith.constant dense<0.000000e+00> : vector<8x32xf32>
    %31 = vector.multi_reduction <add>, %30, %cst_12 [1] : vector<8x8x32xf32> to vector<8x32xf32>
    %c0_13 = arith.constant 0 : index
    %c0_14 = arith.constant 0 : index
    %32 = vector.load %arg5[%c0_13, %c0_14] : memref<8x32xf32, #tpu.memory_space<vmem>>, vector<8x32xf32>
    tpu.vector_store %arg5[%c0_13, %c0_14], %31 {strides = array<i32>} : memref<8x32xf32, #tpu.memory_space<vmem>>, vector<8x32xf32>,
    %33 = vector.shape_cast %28 : vector<8x8x1xf32> to vector<8x8xf32>
    %c0_15 = arith.constant 0 : index
    %c0_16 = arith.constant 0 : index
    %34 = vector.load %arg6[%c0_15, %c0_16] : memref<8x8xf32, #tpu.memory_space<vmem>>, vector<8x8xf32>
    tpu.vector_store %arg6[%c0_15, %c0_16], %33 {strides = array<i32>} : memref<8x8xf32, #tpu.memory_space<vmem>>, vector<8x8xf32>,
    return
  }
  func.func @transform_0(%arg0: i32) -> (i32, i32, i32) {
    %c0_i32 = arith.constant 0 : i32
    %c0_i32_0 = arith.constant 0 : i32
    %c0_i32_1 = arith.constant 0 : i32
    return %arg0, %c0_i32, %c0_i32_0 : i32, i32, i32
  }
  func.func @transform_1(%arg0: i32) -> (i32, i32) {
    %c0_i32 = arith.constant 0 : i32
    %c0_i32_0 = arith.constant 0 : i32
    %c0_i32_1 = arith.constant 0 : i32
    return %c0_i32, %c0_i32_0 : i32, i32
  }
  func.func @transform_2(%arg0: i32) -> (i32, i32) {
    %c0_i32 = arith.constant 0 : i32
    %c0_i32_0 = arith.constant 0 : i32
    %c0_i32_1 = arith.constant 0 : i32
    return %c0_i32, %c0_i32_0 : i32, i32
  }
  func.func @transform_3(%arg0: i32) -> (i32, i32) {
    %c0_i32 = arith.constant 0 : i32
    %c0_i32_0 = arith.constant 0 : i32
    %c0_i32_1 = arith.constant 0 : i32
    return %c0_i32, %c0_i32_0 : i32, i32
  }
  func.func @transform_4(%arg0: i32) -> (i32, i32) {
    %c0_i32 = arith.constant 0 : i32
    %c0_i32_0 = arith.constant 0 : i32
    return %arg0, %c0_i32 : i32, i32
  }
  func.func @transform_5(%arg0: i32) -> (i32, i32) {
    %c0_i32 = arith.constant 0 : i32
    %c0_i32_0 = arith.constant 0 : i32
    return %arg0, %c0_i32 : i32, i32
  }
}

</mosaic_0001>

<llo_original>
// kernel: tpu_custom_call.1
$region0: #{tpu_custom_call.1}
  #allocation0 [shape = 'u32[]', space=smem, size = 0x4, offset = 0x4, fixed_abs, tag = 'smem constant byte address 0x4 - core index']
  #allocation1 [shape = 'u32[72,128]{1,0:T(1,128)}', space=vmem, size = 0x9000, scoped, tag = 'internal scratch']
  %s0 = inlined_call_operand.hbm [shape: f32[16,8,32], index: 0, kind: input, shape index: {}]
  %s1 = inlined_call_operand.vmem [shape: f32[32,16], index: 1, kind: input, shape index: {}]
  %s2 = inlined_call_operand.vmem [shape: f32[1,16], index: 2, kind: input, shape index: {}]
  %s3 = inlined_call_operand.vmem [shape: f32[1,16], index: 3, kind: input, shape index: {}]
  %s4 = inlined_call_operand.hbm [shape: f32[16,32], index: 4, kind: output, shape index: {0}]
  %s5 = inlined_call_operand.vmem [shape: f32[16,8], index: 5, kind: output, shape index: {1}]
  %6 = xla_tuple %s4, %s5
  %s7 = sld [smem:[#allocation0]]
  $region61: #{tpu_custom_call.1} parent=0
    _
  %s9 = ssub.s32 1, %s7
  %s10 = scalar_select 0, %s9, %s7
  $region1: #{tpu_custom_call.1} parent=0
    #allocation2 [shape = 'u8[65536]{0}', space=vmem, size = 0x10000, scoped, tag = 'input window, operand 0']
    #allocation3 [shape = 's32[2]{0}', space=sflag, size = 0x8, scoped, tag = 'scoped memory for tpu_custom_call.1']
    #allocation4 [shape = 's32[2]{0}', space=sflag, size = 0x8, scoped, tag = 'scoped memory for tpu_custom_call.1']
    #allocation5 [shape = 'u8[8192]{0}', space=vmem, size = 0x2000, scoped, tag = 'output window, operand 0']
    %11 = vsyncpa [#allocation3], 0
    %s12 = scalar_lea.sflag [#allocation3], 1
    %13 = vsyncpa %s12, 0
    %14 = vsyncpa [#allocation4], 0
    %s15 = scalar_lea.sflag [#allocation4], 1
    %16 = vsyncpa %s15, 0
    loop: start=0, step=1, limit=4
    $region2: #{tpu_custom_call.1} parent=1 // loop_pre_header
      _
    $region3: #{tpu_custom_call.1} parent=1 // loop_header
      %s18 = sphi 0, %s22
      %p19 = scmp.ge.s32.totalorder %s18, 4
      %s28 = sphi 0, %s30
      %s31 = sphi 0, %s28
      %s32 = sphi 0, %s31
      %s48 = sphi 0, %s32
      %s52 = sphi 0, %s52
      %s54 = sphi 0, %s52
      %s55 = sphi 0, %s54
      %s69 = sphi 0, %s55
      %s73 = sphi 0, %s73
      %s75 = sphi 0, %s73
      %s76 = sphi 0, %s75
      %s90 = sphi 0, %s76
      %s94 = sphi 0, %s94
      %s96 = sphi 0, %s94
      %s97 = sphi 0, %s96
      %s111 = sphi 0, %s97
      %s117 = sphi 0, %s119
      %s120 = sphi 0, %s117
      %s121 = sphi 0, %s120
      %s137 = sphi 0, %s121
      %s143 = sphi 0, %s145
      %s146 = sphi 0, %s143
      %s147 = sphi 0, %s146
      %s163 = sphi 0, %s147
    $region4: #{tpu_custom_call.1} parent=1 // loop_header_branch
      %21 = sbr.rel (%p19) target = $region8
    $region5: #{tpu_custom_call.1} parent=1 // loop_body
      %s23 = ssub.s32 %s18, 1
      %s24 = ssub.s32 %s18, 2
      %s25 = sadd.s32 %s18, 1
      %s26 = ssub.s32 %s18, %s25
      %p27 = scmp.eq.s32.totalorder %s26, 0
      %s29 = sadd.s32 %s28, 1
      %s30 = scalar_select %p27, %s28, %s29
      %p33 = pneg %p27
      %p34 = scmp.eq.s32.totalorder %s18, 1
      %p35 = por %p33, %p34
      %p36 = scmp.ne.s32.totalorder %s28, %s31
      %p37 = scmp.eq.s32.totalorder %s18, 0
      %p38 = por %p36, %p37
      %p39 = scmp.ne.s32.totalorder %s28, %s31
      %p40 = scmp.eq.s32.totalorder %s23, 1
      %p41 = por %p39, %p40
      %p42 = scmp.ne.s32.totalorder %s31, %s32
      %p43 = scmp.eq.s32.totalorder %s23, 0
      %p44 = por %p42, %p43
      %p45 = scmp.ne.s32.totalorder %s31, %s32
      %p46 = scmp.eq.s32.totalorder %s24, 1
      %p47 = por %p45, %p46
      %p49 = scmp.ne.s32.totalorder %s32, %s48
      %p50 = scmp.eq.s32.totalorder %s24, 0
      %p51 = por %p49, %p50
      %s53 = sadd.s32 %s52, 1
      %p56 = scmp.eq.s32.totalorder %s18, 1
      %p57 = scmp.ne.s32.totalorder %s52, %s54
      %p58 = scmp.eq.s32.totalorder %s18, 0
      %p59 = por %p57, %p58
      %p60 = scmp.ne.s32.totalorder %s52, %s54
      %p61 = scmp.eq.s32.totalorder %s23, 1
      %p62 = por %p60, %p61
      %p63 = scmp.ne.s32.totalorder %s54, %s55
      %p64 = scmp.eq.s32.totalorder %s23, 0
      %p65 = por %p63, %p64
      %p66 = scmp.ne.s32.totalorder %s54, %s55
      %p67 = scmp.eq.s32.totalorder %s24, 1
      %p68 = por %p66, %p67
      %p70 = scmp.ne.s32.totalorder %s55, %s69
      %p71 = scmp.eq.s32.totalorder %s24, 0
      %p72 = por %p70, %p71
      %s74 = sadd.s32 %s73, 1
      %p77 = scmp.eq.s32.totalorder %s18, 1
      %p78 = scmp.ne.s32.totalorder %s73, %s75
      %p79 = scmp.eq.s32.totalorder %s18, 0
      %p80 = por %p78, %p79
      %p81 = scmp.ne.s32.totalorder %s73, %s75
      %p82 = scmp.eq.s32.totalorder %s23, 1
      %p83 = por %p81, %p82
      %p84 = scmp.ne.s32.totalorder %s75, %s76
      %p85 = scmp.eq.s32.totalorder %s23, 0
      %p86 = por %p84, %p85
      %p87 = scmp.ne.s32.totalorder %s75, %s76
      %p88 = scmp.eq.s32.totalorder %s24, 1
      %p89 = por %p87, %p88
      %p91 = scmp.ne.s32.totalorder %s76, %s90
      %p92 = scmp.eq.s32.totalorder %s24, 0
      %p93 = por %p91, %p92
      %s95 = sadd.s32 %s94, 1
      %p98 = scmp.eq.s32.totalorder %s18, 1
      %p99 = scmp.ne.s32.totalorder %s94, %s96
      %p100 = scmp.eq.s32.totalorder %s18, 0
      %p101 = por %p99, %p100
      %p102 = scmp.ne.s32.totalorder %s94, %s96
      %p103 = scmp.eq.s32.totalorder %s23, 1
      %p104 = por %p102, %p103
      %p105 = scmp.ne.s32.totalorder %s96, %s97
      %p106 = scmp.eq.s32.totalorder %s23, 0
      %p107 = por %p105, %p106
      %p108 = scmp.ne.s32.totalorder %s96, %s97
      %p109 = scmp.eq.s32.totalorder %s24, 1
      %p110 = por %p108, %p109
      %p112 = scmp.ne.s32.totalorder %s97, %s111
      %p113 = scmp.eq.s32.totalorder %s24, 0
      %p114 = por %p112, %p113
      %s115 = ssub.s32 %s18, %s25
      %p116 = scmp.eq.s32.totalorder %s115, 0
      %s118 = sadd.s32 %s117, 1
      %s119 = scalar_select %p116, %s117, %s118
      %p122 = pneg %p116
      %p123 = scmp.eq.s32.totalorder %s18, 1
      %p124 = por %p122, %p123
      %p125 = scmp.ne.s32.totalorder %s117, %s120
      %p126 = scmp.eq.s32.totalorder %s18, 0
      %p127 = por %p125, %p126
      %p128 = scmp.ne.s32.totalorder %s117, %s120
      %p129 = scmp.eq.s32.totalorder %s23, 1
      %p130 = por %p128, %p129
      %p131 = scmp.ne.s32.totalorder %s120, %s121
      %p132 = scmp.eq.s32.totalorder %s23, 0
      %p133 = por %p131, %p132
      %p134 = scmp.ne.s32.totalorder %s120, %s121
      %p135 = scmp.eq.s32.totalorder %s24, 1
      %p136 = por %p134, %p135
      %p138 = scmp.ne.s32.totalorder %s121, %s137
      %p139 = scmp.eq.s32.totalorder %s24, 0
      %p140 = por %p138, %p139
      %s141 = ssub.s32 %s18, %s25
      %p142 = scmp.eq.s32.totalorder %s141, 0
      %s144 = sadd.s32 %s143, 1
      %s145 = scalar_select %p142, %s143, %s144
      %p148 = pneg %p142
      %p149 = scmp.eq.s32.totalorder %s18, 1
      %p150 = por %p148, %p149
      %p151 = scmp.ne.s32.totalorder %s143, %s146
      %p152 = scmp.eq.s32.totalorder %s18, 0
      %p153 = por %p151, %p152
      %p154 = scmp.ne.s32.totalorder %s143, %s146
      %p155 = scmp.eq.s32.totalorder %s23, 1
      %p156 = por %p154, %p155
      %p157 = scmp.ne.s32.totalorder %s146, %s147
      %p158 = scmp.eq.s32.totalorder %s23, 0
      %p159 = por %p157, %p158
      %p160 = scmp.ne.s32.totalorder %s146, %s147
      %p161 = scmp.eq.s32.totalorder %s24, 1
      %p162 = por %p160, %p161
      %p164 = scmp.ne.s32.totalorder %s147, %s163
      %p165 = scmp.eq.s32.totalorder %s24, 0
      %p166 = por %p164, %p165
      %p167 = scmp.le.s32.totalorder 1, %s18
      %p168 = scmp.lt.s32.totalorder %s18, 3
      %p169 = pnand %p167, %p168
      %p170 = pneg %p169
      // Predicated region
      $region9: #{tpu_custom_call.1} parent=5 // pred_check
        _
      $region10: #{tpu_custom_call.1} parent=5 // pred_check_branch
        %172 = sbr.rel (%p169) target = $region12
      $region11: #{tpu_custom_call.1} parent=5 // pred_region
        %s173 = ssub.s32 %s18, 1
        // Predicated region
        $region13: #{tpu_custom_call.1} parent=11 // pred_check
          %p174 = pneg %p65
        $region14: #{tpu_custom_call.1} parent=11 // pred_check_branch
          %176 = sbr.rel (%p174) target = $region16
        $region15: #{tpu_custom_call.1} parent=11 // pred_region
          _
        $region16: #{tpu_custom_call.1} parent=11 // pred_fallthru
          _
        // Predicated region
        $region17: #{tpu_custom_call.1} parent=11 // pred_check
          %p177 = pneg %p86
        $region18: #{tpu_custom_call.1} parent=11 // pred_check_branch
          %179 = sbr.rel (%p177) target = $region20
        $region19: #{tpu_custom_call.1} parent=11 // pred_region
          _
        $region20: #{tpu_custom_call.1} parent=11 // pred_fallthru
          _
        // Predicated region
        $region21: #{tpu_custom_call.1} parent=11 // pred_check
          %p180 = pneg %p107
        $region22: #{tpu_custom_call.1} parent=11 // pred_check_branch
          %182 = sbr.rel (%p180) target = $region24
        $region23: #{tpu_custom_call.1} parent=11 // pred_region
          _
        $region24: #{tpu_custom_call.1} parent=11 // pred_fallthru
          _
      $region12: #{tpu_custom_call.1} parent=5 // pred_fallthru
        _
      %p183 = scmp.lt.s32.totalorder %s18, 2
      // Predicated region
      $region25: #{tpu_custom_call.1} parent=5 // pred_check
        %p184 = pneg %p183
      $region26: #{tpu_custom_call.1} parent=5 // pred_check_branch
        %186 = sbr.rel (%p184) target = $region28
      $region27: #{tpu_custom_call.1} parent=5 // pred_region
        // Predicated region
        $region29: #{tpu_custom_call.1} parent=27 // pred_check
          %p187 = pneg %p38
        $region30: #{tpu_custom_call.1} parent=27 // pred_check_branch
          %189 = sbr.rel (%p187) target = $region32
        $region31: #{tpu_custom_call.1} parent=27 // pred_region
          %s190 = sand.u32 %s28, 1
          %s191 = scalar_lea.sflag [#allocation3], %s190
          %s192 = sand.u32 %s28, 1
          %s193 = smul.addr %s192, 64
          %s194 = scalar_lea.vmem [#allocation2], %s193
          %s195 = smul.u32 8, %s18
          %197 = vsyncadd %s191, 0
          %s198 = smul.addr %s195, 8
          %s199 = scalar_lea.hbm %s0, %s198
          %s200 = sshll.u32 %s199, 4
          %s201 = int_to_ptr.hbm [resolvable:$true] %s200
          %s202 = sshll.u32 %s194, 4
          %s203 = int_to_ptr.vmem [resolvable:$true] %s202
          %208 = dma.hbm_to_vmem [thread:$0]  %s201, 1024, %s203, %s191, 128, 128, 8
        $region32: #{tpu_custom_call.1} parent=27 // pred_fallthru
          _
      $region28: #{tpu_custom_call.1} parent=5 // pred_fallthru
        _
      %p209 = scmp.le.s32.totalorder 1, %s18
      %p210 = scmp.lt.s32.totalorder %s18, 3
      %p211 = pnand %p209, %p210
      %p212 = pneg %p211
      // Predicated region
      $region33: #{tpu_custom_call.1} parent=5 // pred_check
        _
      $region34: #{tpu_custom_call.1} parent=5 // pred_check_branch
        %214 = sbr.rel (%p211) target = $region36
      $region35: #{tpu_custom_call.1} parent=5 // pred_region
        %s215 = ssub.s32 %s18, 1
        %s216 = sand.u32 %s31, 1
        %s217 = scalar_lea.sflag [#allocation3], %s216
        %s218 = sand.u32 %s31, 1
        %s219 = smul.addr %s218, 64
        %s220 = scalar_lea.vmem [#allocation2], %s219
        // Predicated region
        $region37: #{tpu_custom_call.1} parent=35 // pred_check
          %p221 = pneg %p44
        $region38: #{tpu_custom_call.1} parent=35 // pred_check_branch
          %223 = sbr.rel (%p221) target = $region40
        $region39: #{tpu_custom_call.1} parent=35 // pred_region
          %225 = dma.done %s217, 1024
        $region40: #{tpu_custom_call.1} parent=35 // pred_fallthru
          _
        %s226 = sand.u32 %s31, 1
        %s227 = scalar_lea.sflag [#allocation3], %s226
        %s228 = sand.u32 %s31, 1
        %s229 = smul.addr %s228, 64
        %s230 = scalar_lea.vmem [#allocation2], %s229
        %p231 = pneg %p44
        %p232 = pneg %p41
        %p233 = pneg %p65
        %p234 = pneg %p62
        %p235 = pneg %p86
        %p236 = pneg %p83
        %p237 = pneg %p107
        %p238 = pneg %p104
        %p239 = pneg %p133
        %p240 = pneg %p130
        %s241 = sand.u32 %s120, 1
        %s242 = scalar_lea.sflag [#allocation4], %s241
        %s243 = sand.u32 %s120, 1
        %s244 = smul.addr %s243, 8
        %s245 = scalar_lea.vmem [#allocation5], %s244
        %p246 = pneg %p159
        %p247 = pneg %p156
        %p248 = scmp.lt.s32.totalorder %s23, 1
        %s249 = scalar_select %p248, %s23, 1
        %s250 = smul.addr %s249, 8
        %s251 = scalar_lea.vmem %s5, %s250
        %s252 = smul.u32 8, %s23
        %p253 = scmp.lt.s32.totalorder %s23, 1
        %s254 = scalar_select %p253, %s23, 1
        %s255 = smul.addr %s254, 8
        %s256 = scalar_lea.vmem %s5, %s255
        %v257 = vld [vmem:[%s220] sm:$0xff]
        %v258 = vld [vmem:[%s220 + $0x8] sm:$0xff]
        %v259 = vld [vmem:[%s220 + $0x10] sm:$0xff]
        %v260 = vld [vmem:[%s220 + $0x18] sm:$0xff]
        %v261 = vld [vmem:[%s220 + $0x20] sm:$0xff]
        %v262 = vld [vmem:[%s220 + $0x28] sm:$0xff]
        %v263 = vld [vmem:[%s220 + $0x30] sm:$0xff]
        %v264 = vld [vmem:[%s220 + $0x38] sm:$0xff]
        %v265 = vld [vmem:[%s1] sm:$0xff]
        %v266 = vld [vmem:[%s1 + $0x8] sm:$0xff]
        %v267 = vld [vmem:[%s1 + $0x10] sm:$0xff]
        %v268 = vld [vmem:[%s1 + $0x18] sm:$0xff]
        %v269 = vld [vmem:[%s2] sm:$0x1]
        %v271 = vperm.slane %v269, 0
        %vm273 = vcmask 261120
        %v275 = vsel %vm273, %v257, 0
        %v278 = vsel %vm273, %v258, 0
        %v281 = vsel %vm273, %v259, 0
        %v284 = vsel %vm273, %v260, 0
        %v287 = vsel %vm273, %v261, 0
        %v290 = vsel %vm273, %v262, 0
        %v293 = vsel %vm273, %v263, 0
        %v296 = vsel %vm273, %v264, 0
        %298 = vmatpush.msra.mxu0 0.0
        %299 = vmatpush.msra.mxu0 0.0
        %300 = vmatpush.msra.mxu0 0.0
        %301 = vmatpush.msra.mxu0 0.0
        %302 = vmatpush.msra.mxu0 0.0
        %303 = vmatpush.msra.mxu0 0.0
        %304 = vmatpush.msra.mxu0 0.0
        %305 = vmatpush.msra.mxu0 0.0
        %306 = vmatpush.msra.mxu0 0.0
        %307 = vmatpush.msra.mxu0 0.0
        %308 = vmatpush.msra.mxu0 0.0
        %309 = vmatpush.msra.mxu0 0.0
        %310 = vmatpush.msra.mxu0 %v268
        %311 = vmatpush.msra.mxu0 %v267
        %312 = vmatpush.msra.mxu0 %v266
        %313 = vmatpush.msra.mxu0 %v265
        %314 = vmatmul.f32.gmra.mxu0 %v275
        %v315 = vpop.f32.mrf.mxu0
        %v316 = vadd.f32 %v271, %v315
        %317 = vmatmul.f32.gmra.mxu0 %v278
        %v318 = vpop.f32.mrf.mxu0
        %v319 = vadd.f32 %v271, %v318
        %320 = vmatmul.f32.gmra.mxu0 %v281
        %v321 = vpop.f32.mrf.mxu0
        %v322 = vadd.f32 %v271, %v321
        %323 = vmatmul.f32.gmra.mxu0 %v284
        %v324 = vpop.f32.mrf.mxu0
        %v325 = vadd.f32 %v271, %v324
        %326 = vmatmul.f32.gmra.mxu0 %v287
        %v327 = vpop.f32.mrf.mxu0
        %v328 = vadd.f32 %v271, %v327
        %329 = vmatmul.f32.gmra.mxu0 %v290
        %v330 = vpop.f32.mrf.mxu0
        %v331 = vadd.f32 %v271, %v330
        %332 = vmatmul.f32.gmra.mxu0 %v293
        %v333 = vpop.f32.mrf.mxu0
        %v334 = vadd.f32 %v271, %v333
        %335 = vmatmul.f32.gmra.mxu0 %v296
        %v336 = vpop.f32.mrf.mxu0
        %v337 = vadd.f32 %v271, %v336
        %338 = vdwg.mxu0
        %v339 = vtanh.pop %v316
        %v340 = vtanh.pop %v319
        %v341 = vtanh.pop %v322
        %v342 = vtanh.pop %v325
        %v343 = vtanh.pop %v328
        %v344 = vtanh.pop %v331
        %v345 = vtanh.pop %v334
        %v346 = vtanh.pop %v337
        %v347 = vld [vmem:[%s3] sm:$0x1]
        %v349 = vperm.slane %v347, 0
        %v351 = vmul.f32 %v339, %v349
        %v352 = vmul.f32 %v340, %v349
        %v353 = vmul.f32 %v341, %v349
        %v354 = vmul.f32 %v342, %v349
        %v355 = vmul.f32 %v343, %v349
        %v356 = vmul.f32 %v344, %v349
        %v357 = vmul.f32 %v345, %v349
        %v358 = vmul.f32 %v346, %v349
        %vm359 = vcmask 130048
        %v360 = vsel %vm359, %v351, 0.0
        %361 = vadd.xlane.f32.xlu0 %v360
        %v362 = vpop.xlane.xlu0 %361
        %v363 = vsel %vm359, %v352, 0.0
        %364 = vadd.xlane.f32.xlu0 %v363
        %v365 = vpop.xlane.xlu0 %364
        %v366 = vsel %vm359, %v353, 0.0
        %367 = vadd.xlane.f32.xlu0 %v366
        %v368 = vpop.xlane.xlu0 %367
        %v369 = vsel %vm359, %v354, 0.0
        %370 = vadd.xlane.f32.xlu0 %v369
        %v371 = vpop.xlane.xlu0 %370
        %v372 = vsel %vm359, %v355, 0.0
        %373 = vadd.xlane.f32.xlu0 %v372
        %v374 = vpop.xlane.xlu0 %373
        %v375 = vsel %vm359, %v356, 0.0
        %376 = vadd.xlane.f32.xlu0 %v375
        %v377 = vpop.xlane.xlu0 %376
        %v378 = vsel %vm359, %v357, 0.0
        %379 = vadd.xlane.f32.xlu0 %v378
        %v380 = vpop.xlane.xlu0 %379
        %v381 = vsel %vm359, %v358, 0.0
        %382 = vadd.xlane.f32.xlu0 %v381
        %v383 = vpop.xlane.xlu0 %382
        %v384 = vrot.slane %v362, 4
        %v385 = vmax.f32 %v362, %v384
        %v386 = vrot.slane %v385, 2
        %v387 = vmax.f32 %v385, %v386
        %v388 = vrot.slane %v387, 1
        %v389 = vmax.f32 %v387, %v388
        %v390 = vrot.slane %v365, 4
        %v391 = vmax.f32 %v365, %v390
        %v392 = vrot.slane %v391, 2
        %v393 = vmax.f32 %v391, %v392
        %v394 = vrot.slane %v393, 1
        %v395 = vmax.f32 %v393, %v394
        %v396 = vrot.slane %v368, 4
        %v397 = vmax.f32 %v368, %v396
        %v398 = vrot.slane %v397, 2
        %v399 = vmax.f32 %v397, %v398
        %v400 = vrot.slane %v399, 1
        %v401 = vmax.f32 %v399, %v400
        %v402 = vrot.slane %v371, 4
        %v403 = vmax.f32 %v371, %v402
        %v404 = vrot.slane %v403, 2
        %v405 = vmax.f32 %v403, %v404
        %v406 = vrot.slane %v405, 1
        %v407 = vmax.f32 %v405, %v406
        %v408 = vrot.slane %v374, 4
        %v409 = vmax.f32 %v374, %v408
        %v410 = vrot.slane %v409, 2
        %v411 = vmax.f32 %v409, %v410
        %v412 = vrot.slane %v411, 1
        %v413 = vmax.f32 %v411, %v412
        %v414 = vrot.slane %v377, 4
        %v415 = vmax.f32 %v377, %v414
        %v416 = vrot.slane %v415, 2
        %v417 = vmax.f32 %v415, %v416
        %v418 = vrot.slane %v417, 1
        %v419 = vmax.f32 %v417, %v418
        %v420 = vrot.slane %v380, 4
        %v421 = vmax.f32 %v380, %v420
        %v422 = vrot.slane %v421, 2
        %v423 = vmax.f32 %v421, %v422
        %v424 = vrot.slane %v423, 1
        %v425 = vmax.f32 %v423, %v424
        %v426 = vrot.slane %v383, 4
        %v427 = vmax.f32 %v383, %v426
        %v428 = vrot.slane %v427, 2
        %v429 = vmax.f32 %v427, %v428
        %v430 = vrot.slane %v429, 1
        %v431 = vmax.f32 %v429, %v430
        %v432 = vsub.f32 %v362, %v389
        %v433 = vsub.f32 %v365, %v395
        %v434 = vsub.f32 %v368, %v401
        %v435 = vsub.f32 %v371, %v407
        %v436 = vsub.f32 %v374, %v413
        %v437 = vsub.f32 %v377, %v419
        %v438 = vsub.f32 %v380, %v425
        %v439 = vsub.f32 %v383, %v431
        %v440 = vmul.f32 %v432, 1.442695
        %v441 = vpow.pop %v440
        %v442 = vmul.f32 %v433, 1.442695
        %v443 = vpow.pop %v442
        %v444 = vmul.f32 %v434, 1.442695
        %v445 = vpow.pop %v444
        %v446 = vmul.f32 %v435, 1.442695
        %v447 = vpow.pop %v446
        %v448 = vmul.f32 %v436, 1.442695
        %v449 = vpow.pop %v448
        %v450 = vmul.f32 %v437, 1.442695
        %v451 = vpow.pop %v450
        %v452 = vmul.f32 %v438, 1.442695
        %v453 = vpow.pop %v452
        %v454 = vmul.f32 %v439, 1.442695
        %v455 = vpow.pop %v454
        %v456 = vrot.slane %v441, 4
        %v457 = vadd.f32 %v441, %v456
        %v458 = vrot.slane %v457, 2
        %v459 = vadd.f32 %v457, %v458
        %v460 = vrot.slane %v459, 1
        %v461 = vadd.f32 %v459, %v460
        %v462 = vrot.slane %v443, 4
        %v463 = vadd.f32 %v443, %v462
        %v464 = vrot.slane %v463, 2
        %v465 = vadd.f32 %v463, %v464
        %v466 = vrot.slane %v465, 1
        %v467 = vadd.f32 %v465, %v466
        %v468 = vrot.slane %v445, 4
        %v469 = vadd.f32 %v445, %v468
        %v470 = vrot.slane %v469, 2
        %v471 = vadd.f32 %v469, %v470
        %v472 = vrot.slane %v471, 1
        %v473 = vadd.f32 %v471, %v472
        %v474 = vrot.slane %v447, 4
        %v475 = vadd.f32 %v447, %v474
        %v476 = vrot.slane %v475, 2
        %v477 = vadd.f32 %v475, %v476
        %v478 = vrot.slane %v477, 1
        %v479 = vadd.f32 %v477, %v478
        %v480 = vrot.slane %v449, 4
        %v481 = vadd.f32 %v449, %v480
        %v482 = vrot.slane %v481, 2
        %v483 = vadd.f32 %v481, %v482
        %v484 = vrot.slane %v483, 1
        %v485 = vadd.f32 %v483, %v484
        %v486 = vrot.slane %v451, 4
        %v487 = vadd.f32 %v451, %v486
        %v488 = vrot.slane %v487, 2
        %v489 = vadd.f32 %v487, %v488
        %v490 = vrot.slane %v489, 1
        %v491 = vadd.f32 %v489, %v490
        %v492 = vrot.slane %v453, 4
        %v493 = vadd.f32 %v453, %v492
        %v494 = vrot.slane %v493, 2
        %v495 = vadd.f32 %v493, %v494
        %v496 = vrot.slane %v495, 1
        %v497 = vadd.f32 %v495, %v496
        %v498 = vrot.slane %v455, 4
        %v499 = vadd.f32 %v455, %v498
        %v500 = vrot.slane %v499, 2
        %v501 = vadd.f32 %v499, %v500
        %v502 = vrot.slane %v501, 1
        %v503 = vadd.f32 %v501, %v502
        %v504 = vrcp.pop %v461
        %v505 = vrcp.pop %v467
        %v506 = vrcp.pop %v473
        %v507 = vrcp.pop %v479
        %v508 = vrcp.pop %v485
        %v509 = vrcp.pop %v491
        %v510 = vrcp.pop %v497
        %v511 = vrcp.pop %v503
        %v512 = vmul.f32 %v461, %v504
        %v513 = vmul.f32 %v467, %v505
        %v514 = vmul.f32 %v473, %v506
        %v515 = vmul.f32 %v479, %v507
        %v516 = vmul.f32 %v485, %v508
        %v517 = vmul.f32 %v491, %v509
        %v518 = vmul.f32 %v497, %v510
        %v519 = vmul.f32 %v503, %v511
        %v520 = vsub.f32 2.0, %v512
        %v521 = vsub.f32 2.0, %v513
        %v522 = vsub.f32 2.0, %v514
        %v523 = vsub.f32 2.0, %v515
        %v524 = vsub.f32 2.0, %v516
        %v525 = vsub.f32 2.0, %v517
        %v526 = vsub.f32 2.0, %v518
        %v527 = vsub.f32 2.0, %v519
        %v528 = vmul.f32 %v504, %v520
        %v529 = vmul.f32 %v505, %v521
        %v530 = vmul.f32 %v506, %v522
        %v531 = vmul.f32 %v507, %v523
        %v532 = vmul.f32 %v508, %v524
        %v533 = vmul.f32 %v509, %v525
        %v534 = vmul.f32 %v510, %v526
        %v535 = vmul.f32 %v511, %v527
        %v536 = vmul.f32 %v441, %v528
        %v537 = vmul.f32 %v443, %v529
        %v538 = vmul.f32 %v445, %v530
        %v539 = vmul.f32 %v447, %v531
        %v540 = vmul.f32 %v449, %v532
        %v541 = vmul.f32 %v451, %v533
        %v542 = vmul.f32 %v453, %v534
        %v543 = vmul.f32 %v455, %v535
        %v544 = vmul.f32 %v536, %v257
        %v545 = vmul.f32 %v537, %v258
        %v546 = vmul.f32 %v538, %v259
        %v547 = vmul.f32 %v539, %v260
        %v548 = vmul.f32 %v540, %v261
        %v549 = vmul.f32 %v541, %v262
        %v550 = vmul.f32 %v542, %v263
        %v551 = vmul.f32 %v543, %v264
        %v552 = vsel %vm273, %v544, 0.0
        %v553 = vrot.slane %v552, 4
        %v554 = vadd.f32 %v552, %v553
        %v555 = vrot.slane %v554, 2
        %v556 = vadd.f32 %v554, %v555
        %v557 = vrot.slane %v556, 1
        %v558 = vadd.f32 %v556, %v557
        %v559 = vsel %vm273, %v545, 0.0
        %v560 = vrot.slane %v559, 4
        %v561 = vadd.f32 %v559, %v560
        %v562 = vrot.slane %v561, 2
        %v563 = vadd.f32 %v561, %v562
        %v564 = vrot.slane %v563, 1
        %v565 = vadd.f32 %v563, %v564
        %v566 = vsel %vm273, %v546, 0.0
        %v567 = vrot.slane %v566, 4
        %v568 = vadd.f32 %v566, %v567
        %v569 = vrot.slane %v568, 2
        %v570 = vadd.f32 %v568, %v569
        %v571 = vrot.slane %v570, 1
        %v572 = vadd.f32 %v570, %v571
        %v573 = vsel %vm273, %v547, 0.0
        %v574 = vrot.slane %v573, 4
        %v575 = vadd.f32 %v573, %v574
        %v576 = vrot.slane %v575, 2
        %v577 = vadd.f32 %v575, %v576
        %v578 = vrot.slane %v577, 1
        %v579 = vadd.f32 %v577, %v578
        %v580 = vsel %vm273, %v548, 0.0
        %v581 = vrot.slane %v580, 4
        %v582 = vadd.f32 %v580, %v581
        %v583 = vrot.slane %v582, 2
        %v584 = vadd.f32 %v582, %v583
        %v585 = vrot.slane %v584, 1
        %v586 = vadd.f32 %v584, %v585
        %v587 = vsel %vm273, %v549, 0.0
        %v588 = vrot.slane %v587, 4
        %v589 = vadd.f32 %v587, %v588
        %v590 = vrot.slane %v589, 2
        %v591 = vadd.f32 %v589, %v590
        %v592 = vrot.slane %v591, 1
        %v593 = vadd.f32 %v591, %v592
        %v594 = vsel %vm273, %v550, 0.0
        %v595 = vrot.slane %v594, 4
        %v596 = vadd.f32 %v594, %v595
        %v597 = vrot.slane %v596, 2
        %v598 = vadd.f32 %v596, %v597
        %v599 = vrot.slane %v598, 1
        %v600 = vadd.f32 %v598, %v599
        %v601 = vsel %vm273, %v551, 0.0
        %v602 = vrot.slane %v601, 4
        %v603 = vadd.f32 %v601, %v602
        %v604 = vrot.slane %v603, 2
        %v605 = vadd.f32 %v603, %v604
        %v606 = vrot.slane %v605, 1
        %v607 = vadd.f32 %v605, %v606
        %vm616 = vcmask 1041409
        %v617 = vsel %vm616, %v565, %v558
        %vm618 = vcmask 1042434
        %v619 = vsel %vm618, %v572, %v617
        %vm620 = vcmask 1043459
        %v621 = vsel %vm620, %v579, %v619
        %vm622 = vcmask 1044484
        %v623 = vsel %vm622, %v586, %v621
        %vm624 = vcmask 1045509
        %v625 = vsel %vm624, %v593, %v623
        %vm626 = vcmask 1046534
        %v627 = vsel %vm626, %v600, %v625
        %vm628 = vcmask 1047559
        %v629 = vsel %vm628, %v607, %v627
        %631 = vst.msk [vmem:[%s245] sm:$0xff] %vm273, %v629
        %v640 = vlaneseq
        %v641 = vand.u32 %v640, 127
        %v642 = vperm.slane %v536, %v641
        %v643 = vperm.slane %v537, %v641
        %v644 = vperm.slane %v538, %v641
        %v645 = vperm.slane %v539, %v641
        %v646 = vperm.slane %v540, %v641
        %v647 = vperm.slane %v541, %v641
        %v648 = vperm.slane %v542, %v641
        %v649 = vperm.slane %v543, %v641
        %v650 = vsel %vm616, %v643, %v642
        %v651 = vsel %vm618, %v644, %v650
        %v652 = vsel %vm620, %v645, %v651
        %v653 = vsel %vm622, %v646, %v652
        %v654 = vsel %vm624, %v647, %v653
        %v655 = vsel %vm626, %v648, %v654
        %v656 = vsel %vm628, %v649, %v655
        %vm658 = vcmask 64512
        %659 = vst.msk [vmem:[%s256] sm:$0xff] %vm658, %v656
        %s660 = sand.u32 %s120, 1
        %s661 = scalar_lea.sflag [#allocation4], %s660
        %s662 = sand.u32 %s120, 1
        %s663 = smul.addr %s662, 8
        %s664 = scalar_lea.vmem [#allocation5], %s663
        %p665 = scmp.lt.s32.totalorder %s23, 1
        %s666 = scalar_select %p665, %s23, 1
        %s667 = smul.addr %s666, 8
        %s668 = scalar_lea.vmem %s5, %s667
        // Predicated region
        $region41: #{tpu_custom_call.1} parent=35 // pred_check
          %p669 = pneg %p130
        $region42: #{tpu_custom_call.1} parent=35 // pred_check_branch
          %671 = sbr.rel (%p669) target = $region44
        $region43: #{tpu_custom_call.1} parent=35 // pred_region
          %673 = vsyncadd %s661, 0
          %s674 = smul.addr %s23, 8
          %s675 = scalar_lea.hbm %s4, %s674
          %s677 = sshll.u32 %s664, 4
          %s678 = int_to_ptr.vmem [resolvable:$true] %s677
          %s679 = sshll.u32 %s675, 4
          %s680 = int_to_ptr.hbm [resolvable:$true] %s679
          %682 = dma.vmem_to_hbm [thread:$0]  %s678, 128, %s680, %s661
        $region44: #{tpu_custom_call.1} parent=35 // pred_fallthru
          _
        // Predicated region
        $region45: #{tpu_custom_call.1} parent=35 // pred_check
          %p683 = pneg %p156
        $region46: #{tpu_custom_call.1} parent=35 // pred_check_branch
          %685 = sbr.rel (%p683) target = $region48
        $region47: #{tpu_custom_call.1} parent=35 // pred_region
          _
        $region48: #{tpu_custom_call.1} parent=35 // pred_fallthru
          _
      $region36: #{tpu_custom_call.1} parent=5 // pred_fallthru
        _
      %p686 = scmp.le.s32.totalorder 2, %s18
      // Predicated region
      $region49: #{tpu_custom_call.1} parent=5 // pred_check
        %p687 = pneg %p686
      $region50: #{tpu_custom_call.1} parent=5 // pred_check_branch
        %689 = sbr.rel (%p687) target = $region52
      $region51: #{tpu_custom_call.1} parent=5 // pred_region
        %s690 = ssub.s32 %s18, 2
        // Predicated region
        $region53: #{tpu_custom_call.1} parent=51 // pred_check
          %p691 = pneg %p136
        $region54: #{tpu_custom_call.1} parent=51 // pred_check_branch
          %693 = sbr.rel (%p691) target = $region56
        $region55: #{tpu_custom_call.1} parent=51 // pred_region
          %s694 = sand.u32 %s121, 1
          %s695 = scalar_lea.sflag [#allocation4], %s694
          %s696 = sand.u32 %s121, 1
          %s697 = smul.addr %s696, 8
          %s698 = scalar_lea.vmem [#allocation5], %s697
          %700 = dma.done %s695, 128
        $region56: #{tpu_custom_call.1} parent=51 // pred_fallthru
          _
        // Predicated region
        $region57: #{tpu_custom_call.1} parent=51 // pred_check
          %p701 = pneg %p162
        $region58: #{tpu_custom_call.1} parent=51 // pred_check_branch
          %703 = sbr.rel (%p701) target = $region60
        $region59: #{tpu_custom_call.1} parent=51 // pred_region
          %p704 = scmp.lt.s32.totalorder %s24, 1
          %s705 = scalar_select %p704, %s24, 1
          %s706 = smul.addr %s705, 8
          %s707 = scalar_lea.vmem %s5, %s706
        $region60: #{tpu_custom_call.1} parent=51 // pred_fallthru
          _
      $region52: #{tpu_custom_call.1} parent=5 // pred_fallthru
        _
    $region6: #{tpu_custom_call.1} parent=1 // loop_footer
      %s22 = sadd.s32 1, %s18
    $region7: #{tpu_custom_call.1} parent=1 // loop_footer_branch
      %17 = sbr.rel target = $region3
    $region8: #{tpu_custom_call.1} parent=1 // loop_exit
      _
    %708 = vsyncpa [#allocation3], 1
    %s709 = scalar_lea.sflag [#allocation3], 1
    %710 = vsyncpa %s709, 1
    %711 = vsyncpa [#allocation4], 1
    %s712 = scalar_lea.sflag [#allocation4], 1
    %713 = vsyncpa %s712, 1

</llo_original>
